<compile_context>
chip_gen: v7x
topology: tpu7x:2x2x1
jax: 0.10.0
libtpu: 0.0.40
codegen_flags: <defaults>
</compile_context>

<pallas_src>
import functools

import numpy as np
import jax
import jax.numpy as jnp
from jax.experimental import pallas as pl
from jax.experimental.pallas import tpu as pltpu

NODE_INPUT_DIM = 5
JOB_INPUT_DIM = 3
OUTPUT_DIM = 8
EXECUTOR_LEVELS = range(1, 6)        # 5 executor levels
NEG_SLOPE = 0.01                     # nn.LeakyReLU() default

# Structural constants of the single-tile fused kernel.
_FEAT_ROWS = 32      # padded feature (sublane) height of the activation slab
_COL_LANES = 128     # padded flat-sample (lane) width (holds B*N + B*J*L cols)
_SEG_ROWS = 16       # padded number of softmax segments (B + B*J)
_PAD_OFF = -30000.0  # additive offset for padding lanes/rows (exp underflows to 0)


def _leaky(x):
    return jnp.where(x >= 0, x, NEG_SLOPE * x)


# ---------------------------------------------------------------------------
# Fused Pallas kernel: node MLP + job MLP + masking + softmax, one invocation
# ---------------------------------------------------------------------------
def _actor_fused_kernel(x_ref, off_ref, w_ref, b_ref, out_ref, *, bn):
    f32, bf16 = jnp.float32, jnp.bfloat16
    dot = lambda a, b: jnp.dot(a, b, preferred_element_type=f32)

    # Static views into the packed bf16 constant slab.  Every view starts at
    # lane 0 and at a sublane offset that is a multiple of 16 (bf16 tiling).
    w1 = w_ref[0:64, 0:32]       # [W1_node^T ; W1_job^T]  (stacked rows)
    w2 = w_ref[64:96, 0:64]      # blockdiag(W2_node^T, W2_job^T)
    w3 = w_ref[96:112, 0:32]     # blockdiag(W3_node^T, W3_job^T)
    w4 = w_ref[112:128, 0:16]    # row 0: node head, row 1: job head
    segm = w_ref[128:144, :]     # (segment, flat-column) membership, 0/1
    gath = w_ref[144:272, :]     # flat-column -> within-segment lane, 0/1

    b1 = b_ref[0:64, :]          # f32 biases, lane-replicated wrapper-side
    b2 = b_ref[64:96, :]
    b3 = b_ref[96:112, :]
    b4 = b_ref[112:128, :]

    # One fused 4-matmul chain for BOTH branches (node cols [0, bn), job cols
    # [bn, T)): bf16 operands, f32 accumulation; bias + LeakyReLU in f32.
    # Cross-branch blocks are garbage but never read (W2..W4 are block-diag).
    x = x_ref[...]
    h = _leaky(dot(w1, x) + b1)                  # (64, 128)
    h = _leaky(dot(w2, h.astype(bf16)) + b2)     # (32, 128)
    h = _leaky(dot(w3, h.astype(bf16)) + b3)     # (16, 128)
    h4 = dot(w4, h.astype(bf16)) + b4            # (16, 128); row0=node, row1=job logits

    # Select node/job logit per flat column, then scatter every softmax
    # segment into its own lane-dense output row with a single 0/1 matmul.
    lane = jax.lax.broadcasted_iota(jnp.int32, (1, _COL_LANES), 1)
    z = jnp.where(lane < bn, h4[0:1, :], h4[1:2, :]).astype(bf16)   # (1, 128)
    logits = dot(segm * z, gath)                 # (16, 128): one segment per row

    # Masked, numerically-stable softmax per row (f32).  Padding lanes/rows
    # carry a -3e4 offset so they vanish even for fully-masked segments.
    masked = logits + off_ref[...]
    m = jnp.max(masked, axis=-1, keepdims=True)
    e = jnp.exp(masked - m)
    den = jnp.sum(e, axis=-1, keepdims=True)
    out_ref[...] = e * pl.reciprocal(den, approx=True)   # single unmasked store


# ---------------------------------------------------------------------------
# One-time constant packing (hoisted out of the per-call path)
# ---------------------------------------------------------------------------
def build_actor_constants(params, batch_size, num_nodes, num_jobs,
                          executor_levels=EXECUTOR_LEVELS):
    B, N, J = batch_size, num_nodes, num_jobs
    L = len(executor_levels)
    BN, BJ = B * N, B * J
    T = BN + BJ * L
    S = B + BJ
    Fn = NODE_INPUT_DIM + 3 * OUTPUT_DIM      # 29
    Fj = JOB_INPUT_DIM + 2 * OUTPUT_DIM + 1   # 20
    # Single-tile kernel: everything must fit one (sublane, lane) tile.
    assert Fn <= _FEAT_ROWS and Fj <= _FEAT_ROWS
    assert T <= _COL_LANES and S <= _SEG_ROWS
    assert N <= _COL_LANES and L <= _COL_LANES

    g = lambda k: np.asarray(params[k], np.float32)

    # --- packed bf16 constant slab: weights + segment membership + gather ---
    wpack = np.zeros((272, _COL_LANES), np.float32)
    w1n = np.concatenate([g("w1n"), g("w1g"), g("w1d"), g("w1s")], axis=0).T   # (32, 29)
    w1j = np.concatenate([g("wj1j"), g("wj1d"), g("wj1s"), g("wj1a")], axis=0).T  # (32, 20)
    wpack[0:32, 0:Fn] = w1n
    wpack[32:64, 0:Fj] = w1j
    wpack[64:80, 0:32] = g("w2").T
    wpack[80:96, 32:64] = g("wj2").T
    wpack[96:104, 0:16] = g("w3").T
    wpack[104:112, 16:32] = g("wj3").T
    wpack[112, 0:8] = g("w4r")[0]
    wpack[113, 8:16] = g("wj4r")[0]
    for b in range(B):                                   # node softmax segments
        wpack[128 + b, b * N:(b + 1) * N] = 1.0
    for q in range(BJ):                                  # job softmax segments
        wpack[128 + B + q, BN + q * L:BN + (q + 1) * L] = 1.0
    for t in range(BN):                                  # flat col -> within-segment lane
        wpack[144 + t, t % N] = 1.0
    for t in range(BJ * L):
        wpack[144 + BN + t, t % L] = 1.0

    # --- f32 bias slab, lane-replicated so the kernel adds it directly ------
    bpack = np.zeros((128, _COL_LANES), np.float32)
    bpack[0:32, :] = g("b1").reshape(32, 1)
    bpack[32:64, :] = g("bj1").reshape(32, 1)
    bpack[64:80, :] = g("b2").reshape(16, 1)
    bpack[80:96, :] = g("bj2").reshape(16, 1)
    bpack[96:104, :] = g("b3").reshape(8, 1)
    bpack[104:112, :] = g("bj3").reshape(8, 1)
    bpack[112, :] = g("b4")[0, 0]
    bpack[113, :] = g("bj4")[0, 0]

    return dict(
        wpack=jnp.asarray(wpack, jnp.bfloat16),
        bpack=jnp.asarray(bpack, jnp.float32),
        acts=jnp.asarray([l / 50.0 for l in executor_levels], jnp.float32),
        B=B, N=N, J=J, L=L,
    )


# ---------------------------------------------------------------------------
# Per-call wrapper: layout plumbing + single pallas_call
# ---------------------------------------------------------------------------
def actor_network_pallas(consts, node_inputs, gcn_outputs, job_inputs,
                         gsn_dag_summary, gsn_global_summary,
                         node_valid_mask, job_valid_mask, gsn_summ_backward_map):
    f32, bf16 = jnp.float32, jnp.bfloat16
    B, N, J, L = consts["B"], consts["N"], consts["J"], consts["L"]
    ni, ji, D = NODE_INPUT_DIM, JOB_INPUT_DIM, OUTPUT_DIM
    BN, BJ = B * N, B * J
    T = BN + BJ * L

    node_r = node_inputs.reshape(B, N, ni).astype(f32)
    gcn_r = gcn_outputs.reshape(B, N, D).astype(f32)
    job_r = job_inputs.reshape(B, J, ji).astype(f32)
    dag_r = gsn_dag_summary.reshape(B, J, D).astype(f32)
    glob_r = gsn_global_summary.reshape(B, 1, D).astype(f32)

    # torch.bmm(gsn_summ_backward_map, dag_summ) done wrapper-side: no O(B^2)
    # block-diagonal map is materialized anymore (scaling fix from review).
    dag_ext = jnp.einsum("nj,bjd->bnd", gsn_summ_backward_map.astype(f32), dag_r,
                         precision=jax.lax.Precision.HIGHEST)
    glob_node = jnp.broadcast_to(glob_r, (B, N, D))
    node_feat = jnp.concatenate([node_r, gcn_r, dag_ext, glob_node], axis=-1)  # (B,N,29)

    # expand_act_on_state (pure data movement)
    glob_job = jnp.broadcast_to(glob_r, (B, J, D))
    merge_job = jnp.concatenate([job_r, dag_r, glob_job], axis=-1)             # (B,J,19)
    exp_job = jnp.repeat(merge_job, L, axis=1)                                 # (B,J*L,19)
    act_col = jnp.broadcast_to(jnp.tile(consts["acts"], (J,))[None, :, None],
                               (B, J * L, 1))
    job_feat = jnp.concatenate([exp_job, act_col], axis=-1)                    # (B,J*L,20)

    # Single lane-dense bf16 activation slab: node cols [0,BN), job cols [BN,T).
    x = jnp.zeros((_FEAT_ROWS, _COL_LANES), f32)
    x = x.at[0:node_feat.shape[-1], 0:BN].set(node_feat.reshape(BN, -1).T)
    x = x.at[0:job_feat.shape[-1], BN:T].set(job_feat.reshape(BJ * L, -1).T)
    x = x.astype(bf16)

    # Combined additive mask slab: (mask-1)*1e4 on real lanes, -3e4 on padding.
    off = jnp.full((_SEG_ROWS, _COL_LANES), _PAD_OFF, f32)
    off = off.at[0:B, 0:N].set((node_valid_mask.astype(f32) - 1.0) * 10000.0)
    off = off.at[B:B + BJ, 0:L].set(
        (job_valid_mask.reshape(BJ, L).astype(f32) - 1.0) * 10000.0)

    vmem = lambda: pl.BlockSpec(memory_space=pltpu.MemorySpace.VMEM)
    out = pl.pallas_call(
        functools.partial(_actor_fused_kernel, bn=BN),
        out_shape=jax.ShapeDtypeStruct((_SEG_ROWS, _COL_LANES), f32),
        in_specs=[vmem(), vmem(), vmem(), vmem()],
        out_specs=vmem(),
    )(x, off, consts["wpack"], consts["bpack"])

    node_probs = out[0:B, 0:N]
    job_probs = out[B:B + BJ, 0:L].reshape(B, J, L)
    return node_probs, job_probs


# ---------------------------------------------------------------------------
# Pure-JAX reference (mirrors the PyTorch forward exactly, f32)
# ---------------------------------------------------------------------------
def _mm(a, b):
    return jnp.matmul(a, b, precision=jax.lax.Precision.HIGHEST)


def _mlp_ref(x, w1, b1, w2, b2, w3, b3, w4r, b4):
    h = _leaky(_mm(x, w1) + b1)
    h = _leaky(_mm(h, w2) + b2)
    h = _leaky(_mm(h, w3) + b3)
    return _mm(h, w4r.T) + b4


def actor_network_ref(params, node_inputs, gcn_outputs, job_inputs,
                      gsn_dag_summary, gsn_global_summary,
                      node_valid_mask, job_valid_mask,
                      gsn_summ_backward_map, act_levels):
    B, N = node_valid_mask.shape
    ni = params["w1n"].shape[0]
    D = params["w1g"].shape[0]
    ji = params["wj1j"].shape[0]
    L = len(act_levels)

    node_r = node_inputs.reshape(B, -1, ni)
    job_r = job_inputs.reshape(B, -1, ji)
    gcn_r = gcn_outputs.reshape(B, -1, D)
    dag_r = gsn_dag_summary.reshape(B, -1, D)
    J = dag_r.shape[1]
    bmap = jnp.broadcast_to(gsn_summ_backward_map[None], (B, N, J))
    dag_ext = jnp.einsum("bnj,bjd->bnd", bmap, dag_r,
                         precision=jax.lax.Precision.HIGHEST)
    glob_r = gsn_global_summary.reshape(B, -1, D)
    glob_job = jnp.tile(glob_r, (1, J, 1))
    glob_node = jnp.tile(glob_r, (1, N, 1))

    merge_node = jnp.concatenate([node_r, gcn_r, dag_ext, glob_node], axis=2)
    w1 = jnp.concatenate([params["w1n"], params["w1g"], params["w1d"], params["w1s"]], axis=0)
    node_out = _mlp_ref(merge_node, w1, params["b1"], params["w2"], params["b2"],
                        params["w3"], params["b3"], params["w4r"], params["b4"])[..., 0]
    node_out = node_out + (node_valid_mask - 1.0) * 10000.0
    node_probs = jax.nn.softmax(node_out, axis=-1)

    merge_job = jnp.concatenate([job_r, dag_r, glob_job], axis=2)
    acts = jnp.asarray(act_levels, jnp.float32)
    acts_col = jnp.broadcast_to(jnp.tile(acts, (J,))[None, :, None], (B, J * L, 1))
    expanded = jnp.concatenate([jnp.repeat(merge_job, L, axis=1), acts_col], axis=2)
    wj1 = jnp.concatenate([params["wj1j"], params["wj1d"], params["wj1s"], params["wj1a"]], axis=0)
    job_out = _mlp_ref(expanded, wj1, params["bj1"], params["wj2"], params["bj2"],
                       params["wj3"], params["bj3"], params["wj4r"], params["bj4"])[..., 0]
    job_out = job_out + (job_valid_mask - 1.0) * 10000.0
    job_probs = jax.nn.softmax(job_out.reshape(B, J, L), axis=-1)
    return node_probs, job_probs


# ---------------------------------------------------------------------------
# Deterministic parameter init (Linear weights stored as (in, out))
# ---------------------------------------------------------------------------
def init_params(key, ni, ji, D):
    ks = jax.random.split(key, 22)
    w = lambda k, s: jax.random.normal(k, s, jnp.float32) * 0.1
    return dict(
        # fc_node: (ni + 3D) -> 32 -> 16 -> 8 -> 1 (first layer split by concat piece)
        w1n=w(ks[0], (ni, 32)), w1g=w(ks[1], (D, 32)),
        w1d=w(ks[2], (D, 32)), w1s=w(ks[3], (D, 32)), b1=w(ks[4], (1, 32)),
        w2=w(ks[5], (32, 16)), b2=w(ks[6], (1, 16)),
        w3=w(ks[7], (16, 8)), b3=w(ks[8], (1, 8)),
        w4r=w(ks[9], (1, 8)), b4=w(ks[10], (1, 1)),
        # fc_job: (ji + 2D + 1) -> 32 -> 16 -> 8 -> 1
        wj1j=w(ks[11], (ji, 32)), wj1d=w(ks[12], (D, 32)),
        wj1s=w(ks[13], (D, 32)), wj1a=w(ks[14], (1, 32)), bj1=w(ks[15], (1, 32)),
        wj2=w(ks[16], (32, 16)), bj2=w(ks[17], (1, 16)),
        wj3=w(ks[18], (16, 8)), bj3=w(ks[19], (1, 8)),
        wj4r=w(ks[20], (1, 8)), bj4=w(ks[21], (1, 1)),
    )


if __name__ == "__main__":
    B, N, J = 2, 8, 4
    ni, ji, D = NODE_INPUT_DIM, JOB_INPUT_DIM, OUTPUT_DIM
    L = len(EXECUTOR_LEVELS)
    act_levels = tuple(l / 50.0 for l in EXECUTOR_LEVELS)

    key = jax.random.PRNGKey(0)
    kp, k1, k2, k3, k4, k5, k6, k7 = jax.random.split(key, 8)
    params = init_params(kp, ni, ji, D)

    node_inputs = jax.random.normal(k1, (B * N, ni), jnp.float32)
    gcn_outputs = jax.random.normal(k2, (B * N, D), jnp.float32)
    job_inputs = jax.random.normal(k3, (B * J, ji), jnp.float32)
    gsn_dag_summary = jax.random.normal(k4, (B * J, D), jnp.float32)
    gsn_global_summary = jax.random.normal(k5, (B, D), jnp.float32)
    node_valid_mask = (jax.random.uniform(k6, (B, N)) > 0.3).astype(jnp.float32)
    job_valid_mask = (jax.random.uniform(k7, (B, J * L)) > 0.3).astype(jnp.float32)
    # each node belongs to one job (0/1 assignment matrix)
    gsn_summ_backward_map = jax.nn.one_hot(jnp.arange(N) // (N // J), J, dtype=jnp.float32)

    # Built ONCE per parameter set (hoisted out of the per-call path).
    consts = build_actor_constants(params, B, N, J, EXECUTOR_LEVELS)

    node_probs, job_probs = actor_network_pallas(
        consts, node_inputs, gcn_outputs, job_inputs, gsn_dag_summary,
        gsn_global_summary, node_valid_mask, job_valid_mask,
        gsn_summ_backward_map)
    jax.block_until_ready((node_probs, job_probs))

    ref_node, ref_job = actor_network_ref(
        params, node_inputs, gcn_outputs, job_inputs, gsn_dag_summary,
        gsn_global_summary, node_valid_mask, job_valid_mask,
        gsn_summ_backward_map, act_levels)

    assert node_probs.shape == (B, N) and job_probs.shape == (B, J, L)
    # tolerance covers bf16 matmul operands + the approximate (EUP) reciprocal
    assert jnp.allclose(node_probs, ref_node, atol=5e-3, rtol=5e-3)
    assert jnp.allclose(job_probs, ref_job, atol=5e-3, rtol=5e-3)
    print("KERNEL_OK")
</pallas_src>

<mosaic_0001>
module attributes {stable_mosaic.version = 11 : i64} {
  func.func @_actor_fused_kernel(%arg0: memref<32x128xbf16, #tpu.memory_space<vmem>>, %arg1: memref<16x128xf32, #tpu.memory_space<vmem>>, %arg2: memref<272x128xbf16, #tpu.memory_space<vmem>>, %arg3: memref<128x128xf32, #tpu.memory_space<vmem>>, %arg4: memref<16x128xf32, #tpu.memory_space<vmem>>) attributes {dimension_semantics = [], scalar_prefetch = 0 : i64, scratch_operands = 0 : i64, tpu.core_type = #tpu.core_type<tc>} {
    %c0 = arith.constant 0 : index
    %c0_0 = arith.constant 0 : index
    %0 = vector.load %arg2[%c0, %c0_0] : memref<272x128xbf16, #tpu.memory_space<vmem>>, vector<64x32xbf16>
    %c64 = arith.constant 64 : index
    %c0_1 = arith.constant 0 : index
    %1 = vector.load %arg2[%c64, %c0_1] : memref<272x128xbf16, #tpu.memory_space<vmem>>, vector<32x64xbf16>
    %c96 = arith.constant 96 : index
    %c0_2 = arith.constant 0 : index
    %2 = vector.load %arg2[%c96, %c0_2] : memref<272x128xbf16, #tpu.memory_space<vmem>>, vector<16x32xbf16>
    %c112 = arith.constant 112 : index
    %c0_3 = arith.constant 0 : index
    %3 = vector.load %arg2[%c112, %c0_3] : memref<272x128xbf16, #tpu.memory_space<vmem>>, vector<16x16xbf16>
    %c128 = arith.constant 128 : index
    %c0_4 = arith.constant 0 : index
    %4 = vector.load %arg2[%c128, %c0_4] : memref<272x128xbf16, #tpu.memory_space<vmem>>, vector<16x128xbf16>
    %c144 = arith.constant 144 : index
    %c0_5 = arith.constant 0 : index
    %5 = vector.load %arg2[%c144, %c0_5] : memref<272x128xbf16, #tpu.memory_space<vmem>>, vector<128x128xbf16>
    %c0_6 = arith.constant 0 : index
    %c0_7 = arith.constant 0 : index
    %6 = vector.load %arg3[%c0_6, %c0_7] : memref<128x128xf32, #tpu.memory_space<vmem>>, vector<64x128xf32>
    %c64_8 = arith.constant 64 : index
    %c0_9 = arith.constant 0 : index
    %7 = vector.load %arg3[%c64_8, %c0_9] : memref<128x128xf32, #tpu.memory_space<vmem>>, vector<32x128xf32>
    %c96_10 = arith.constant 96 : index
    %c0_11 = arith.constant 0 : index
    %8 = vector.load %arg3[%c96_10, %c0_11] : memref<128x128xf32, #tpu.memory_space<vmem>>, vector<16x128xf32>
    %c112_12 = arith.constant 112 : index
    %c0_13 = arith.constant 0 : index
    %9 = vector.load %arg3[%c112_12, %c0_13] : memref<128x128xf32, #tpu.memory_space<vmem>>, vector<16x128xf32>
    %c0_14 = arith.constant 0 : index
    %c0_15 = arith.constant 0 : index
    %10 = vector.load %arg0[%c0_14, %c0_15] : memref<32x128xbf16, #tpu.memory_space<vmem>>, vector<32x128xbf16>
    %cst = arith.constant dense<0.000000e+00> : vector<64x128xf32>
    %11 = tpu.matmul %0, %10, %cst {dimension_numbers = #tpu.dot_dimension_numbers<[1], [0], [0], [1], [0, 0, 1, 1], [], []>} : vector<64x32xbf16>, vector<32x128xbf16>, vector<64x128xf32> -> vector<64x128xf32>
    %12 = arith.addf %11, %6 : vector<64x128xf32>
    %cst_16 = arith.constant 0.000000e+00 : f32
    %13 = vector.broadcast %cst_16 : f32 to vector<64x128xf32>
    %14 = arith.cmpf oge, %12, %13 : vector<64x128xf32>
    %cst_17 = arith.constant 0.00999999977 : f32
    %15 = vector.broadcast %cst_17 : f32 to vector<64x128xf32>
    %16 = arith.mulf %15, %12 : vector<64x128xf32>
    %17 = arith.select %14, %12, %16 : vector<64x128xi1>, vector<64x128xf32>
    %18 = arith.truncf %17 : vector<64x128xf32> to vector<64x128xbf16>
    %cst_18 = arith.constant dense<0.000000e+00> : vector<32x128xf32>
    %19 = tpu.matmul %1, %18, %cst_18 {dimension_numbers = #tpu.dot_dimension_numbers<[1], [0], [0], [1], [0, 0, 1, 1], [], []>} : vector<32x64xbf16>, vector<64x128xbf16>, vector<32x128xf32> -> vector<32x128xf32>
    %20 = arith.addf %19, %7 : vector<32x128xf32>
    %cst_19 = arith.constant 0.000000e+00 : f32
    %21 = vector.broadcast %cst_19 : f32 to vector<32x128xf32>
    %22 = arith.cmpf oge, %20, %21 : vector<32x128xf32>
    %cst_20 = arith.constant 0.00999999977 : f32
    %23 = vector.broadcast %cst_20 : f32 to vector<32x128xf32>
    %24 = arith.mulf %23, %20 : vector<32x128xf32>
    %25 = arith.select %22, %20, %24 : vector<32x128xi1>, vector<32x128xf32>
    %26 = arith.truncf %25 : vector<32x128xf32> to vector<32x128xbf16>
    %cst_21 = arith.constant dense<0.000000e+00> : vector<16x128xf32>
    %27 = tpu.matmul %2, %26, %cst_21 {dimension_numbers = #tpu.dot_dimension_numbers<[1], [0], [0], [1], [0, 0, 1, 1], [], []>} : vector<16x32xbf16>, vector<32x128xbf16>, vector<16x128xf32> -> vector<16x128xf32>
    %28 = arith.addf %27, %8 : vector<16x128xf32>
    %cst_22 = arith.constant 0.000000e+00 : f32
    %29 = vector.broadcast %cst_22 : f32 to vector<16x128xf32>
    %30 = arith.cmpf oge, %28, %29 : vector<16x128xf32>
    %cst_23 = arith.constant 0.00999999977 : f32
    %31 = vector.broadcast %cst_23 : f32 to vector<16x128xf32>
    %32 = arith.mulf %31, %28 : vector<16x128xf32>
    %33 = arith.select %30, %28, %32 : vector<16x128xi1>, vector<16x128xf32>
    %34 = arith.truncf %33 : vector<16x128xf32> to vector<16x128xbf16>
    %cst_24 = arith.constant dense<0.000000e+00> : vector<16x128xf32>
    %35 = tpu.matmul %3, %34, %cst_24 {dimension_numbers = #tpu.dot_dimension_numbers<[1], [0], [0], [1], [0, 0, 1, 1], [], []>} : vector<16x16xbf16>, vector<16x128xbf16>, vector<16x128xf32> -> vector<16x128xf32>
    %36 = arith.addf %35, %9 : vector<16x128xf32>
    %37 = tpu.iota {dimensions = array<i32: 1>} : vector<1x128xi32>
    %c16_i32 = arith.constant 16 : i32
    %38 = vector.broadcast %c16_i32 : i32 to vector<1x128xi32>
    %39 = arith.cmpi slt, %37, %38 : vector<1x128xi32>
    %40 = vector.extract_strided_slice %36 {offsets = [0, 0], sizes = [1, 128], strides = [1, 1]} : vector<16x128xf32> to vector<1x128xf32>
    %41 = vector.extract_strided_slice %36 {offsets = [1, 0], sizes = [1, 128], strides = [1, 1]} : vector<16x128xf32> to vector<1x128xf32>
    %42 = arith.select %39, %40, %41 : vector<1x128xi1>, vector<1x128xf32>
    %43 = arith.truncf %42 : vector<1x128xf32> to vector<1x128xbf16>
    %44 = vector.broadcast %43 : vector<1x128xbf16> to vector<16x128xbf16>
    %45 = arith.mulf %4, %44 : vector<16x128xbf16>
    %cst_25 = arith.constant dense<0.000000e+00> : vector<16x128xf32>
    %46 = tpu.matmul %45, %5, %cst_25 {dimension_numbers = #tpu.dot_dimension_numbers<[1], [0], [0], [1], [0, 0, 1, 1], [], []>} : vector<16x128xbf16>, vector<128x128xbf16>, vector<16x128xf32> -> vector<16x128xf32>
    %c0_26 = arith.constant 0 : index
    %c0_27 = arith.constant 0 : index
    %47 = vector.load %arg1[%c0_26, %c0_27] : memref<16x128xf32, #tpu.memory_space<vmem>>, vector<16x128xf32>
    %48 = arith.addf %46, %47 : vector<16x128xf32>
    %cst_28 = arith.constant dense<0xFF800000> : vector<16xf32>
    %49 = vector.multi_reduction <maximumf>, %48, %cst_28 [1] : vector<16x128xf32> to vector<16xf32>
    %50 = vector.shape_cast %49 : vector<16xf32> to vector<16x1xf32>
    %51 = vector.broadcast %50 : vector<16x1xf32> to vector<16x128xf32>
    %52 = arith.subf %48, %51 : vector<16x128xf32>
    %53 = math.exp %52 : vector<16x128xf32>
    %cst_29 = arith.constant dense<0.000000e+00> : vector<16xf32>
    %54 = vector.multi_reduction <add>, %53, %cst_29 [1] : vector<16x128xf32> to vector<16xf32>
    %55 = vector.shape_cast %54 : vector<16xf32> to vector<16x1xf32>
    %56 = tpu.reciprocal %55 {approx = true} : vector<16x1xf32> -> vector<16x1xf32>
    %57 = vector.broadcast %56 : vector<16x1xf32> to vector<16x128xf32>
    %58 = arith.mulf %53, %57 : vector<16x128xf32>
    %c0_30 = arith.constant 0 : index
    %c0_31 = arith.constant 0 : index
    %59 = vector.load %arg4[%c0_30, %c0_31] : memref<16x128xf32, #tpu.memory_space<vmem>>, vector<16x128xf32>
    tpu.vector_store %arg4[%c0_30, %c0_31], %58 {strides = array<i32>} : memref<16x128xf32, #tpu.memory_space<vmem>>, vector<16x128xf32>,
    return
  }
}

</mosaic_0001>

<llo_original>
// kernel: tpu_custom_call.1
$region0: #{tpu_custom_call.1}
  #allocation0 [shape = 'u32[]', space=smem, size = 0x4, offset = 0x4, fixed_abs, tag = 'smem constant byte address 0x4 - core index']
  #allocation1 [shape = 'u32[144,128]{1,0:T(1,128)}', space=vmem, size = 0x12000, scoped, tag = 'internal scratch']
  %s0 = inlined_call_operand.hbm [shape: bf16[32,128], index: 0, kind: input, shape index: {}]
  %s1 = inlined_call_operand.hbm [shape: f32[16,128], index: 1, kind: input, shape index: {}]
  %s2 = inlined_call_operand.hbm [shape: bf16[272,128], index: 2, kind: input, shape index: {}]
  %s3 = inlined_call_operand.hbm [shape: f32[128,128], index: 3, kind: input, shape index: {}]
  %s4 = inlined_call_operand.hbm [shape: f32[16,128], index: 4, kind: output, shape index: {}]
  %s5 = sld [smem:[#allocation0]]
  $region42: #{tpu_custom_call.1} parent=0
    _
  %s7 = ssub.s32 1, %s5
  %s8 = scalar_select 0, %s7, %s5
  $region1: #{tpu_custom_call.1} parent=0
    #allocation2 [shape = 'u8[8192]{0}', space=vmem, size = 0x2000, scoped, tag = 'input window, operand 0, single buffered']
    #allocation3 [shape = 's32[1]{0}', space=sflag, size = 0x4, scoped, tag = 'scoped memory for tpu_custom_call.1']
    #allocation4 [shape = 's32[1]{0}', space=sflag, size = 0x4, scoped, tag = 'scoped memory for tpu_custom_call.1']
    #allocation5 [shape = 'u8[8192]{0}', space=vmem, size = 0x2000, scoped, tag = 'input window, operand 1, single buffered']
    #allocation6 [shape = 's32[1]{0}', space=sflag, size = 0x4, scoped, tag = 'scoped memory for tpu_custom_call.1']
    #allocation7 [shape = 'u8[69632]{0}', space=vmem, size = 0x11000, scoped, tag = 'input window, operand 2, single buffered']
    #allocation8 [shape = 'u8[65536]{0}', space=vmem, size = 0x10000, scoped, tag = 'input window, operand 3, single buffered']
    #allocation9 [shape = 's32[1]{0}', space=sflag, size = 0x4, scoped, tag = 'scoped memory for tpu_custom_call.1']
    #allocation10 [shape = 'u8[8192]{0}', space=vmem, size = 0x2000, scoped, tag = 'output window, operand 0, single buffered']
    %9 = vsyncpa [#allocation3], 0
    %10 = vsyncpa [#allocation6], 0
    %11 = vsyncpa [#allocation9], 0
    %12 = vsyncpa [#allocation4], 0
    // Predicated region
    $region2: #{tpu_custom_call.1} parent=1 // pred_check
      _
    $region3: #{tpu_custom_call.1} parent=1 // pred_check_branch
      %14 = sbr.rel (0) target = $region5
    $region4: #{tpu_custom_call.1} parent=1 // pred_region
      %s16 = ssub.s32 256, 256
      %17 = vsyncadd [#allocation3], %s16
      %s18 = sshll.u32 [#allocation2], 4
      %s19 = int_to_ptr.vmem [resolvable:$true] %s18
      %24 = dma.hbm_to_vmem [thread:$0]  %s0, 256, %s19, [#allocation3], 64, 64, 4
    $region5: #{tpu_custom_call.1} parent=1 // pred_fallthru
      _
    // Predicated region
    $region6: #{tpu_custom_call.1} parent=1 // pred_check
      _
    $region7: #{tpu_custom_call.1} parent=1 // pred_check_branch
      %26 = sbr.rel (0) target = $region9
    $region8: #{tpu_custom_call.1} parent=1 // pred_region
      %s28 = ssub.s32 256, 256
      %29 = vsyncadd [#allocation6], %s28
      %s30 = sshll.u32 [#allocation5], 4
      %s31 = int_to_ptr.vmem [resolvable:$true] %s30
      %36 = dma.hbm_to_vmem [thread:$0]  %s1, 256, %s31, [#allocation6], 128, 128, 8
    $region9: #{tpu_custom_call.1} parent=1 // pred_fallthru
      _
    // Predicated region
    $region10: #{tpu_custom_call.1} parent=1 // pred_check
      _
    $region11: #{tpu_custom_call.1} parent=1 // pred_check_branch
      %38 = sbr.rel (0) target = $region13
    $region12: #{tpu_custom_call.1} parent=1 // pred_region
      %s40 = ssub.s32 2176, 2176
      %41 = vsyncadd [#allocation6], %s40
      %s42 = sshll.u32 [#allocation7], 4
      %s43 = int_to_ptr.vmem [resolvable:$true] %s42
      %48 = dma.hbm_to_vmem [thread:$0]  %s2, 2176, %s43, [#allocation6], 64, 64, 4
    $region13: #{tpu_custom_call.1} parent=1 // pred_fallthru
      _
    // Predicated region
    $region14: #{tpu_custom_call.1} parent=1 // pred_check
      _
    $region15: #{tpu_custom_call.1} parent=1 // pred_check_branch
      %50 = sbr.rel (0) target = $region17
    $region16: #{tpu_custom_call.1} parent=1 // pred_region
      %s52 = ssub.s32 2048, 2048
      %53 = vsyncadd [#allocation9], %s52
      %s54 = sshll.u32 [#allocation8], 4
      %s55 = int_to_ptr.vmem [resolvable:$true] %s54
      %60 = dma.hbm_to_vmem [thread:$0]  %s3, 2048, %s55, [#allocation9], 128, 128, 8
    $region17: #{tpu_custom_call.1} parent=1 // pred_fallthru
      _
    // Predicated region
    $region18: #{tpu_custom_call.1} parent=1 // pred_check
      _
    $region19: #{tpu_custom_call.1} parent=1 // pred_check_branch
      %62 = sbr.rel (0) target = $region21
    $region20: #{tpu_custom_call.1} parent=1 // pred_region
      %63 = dma.done [#allocation3], 256
    $region21: #{tpu_custom_call.1} parent=1 // pred_fallthru
      _
    // Predicated region
    $region22: #{tpu_custom_call.1} parent=1 // pred_check
      _
    $region23: #{tpu_custom_call.1} parent=1 // pred_check_branch
      %65 = sbr.rel (0) target = $region25
    $region24: #{tpu_custom_call.1} parent=1 // pred_region
      %66 = dma.done [#allocation6], 256
    $region25: #{tpu_custom_call.1} parent=1 // pred_fallthru
      _
    // Predicated region
    $region26: #{tpu_custom_call.1} parent=1 // pred_check
      _
    $region27: #{tpu_custom_call.1} parent=1 // pred_check_branch
      %68 = sbr.rel (0) target = $region29
    $region28: #{tpu_custom_call.1} parent=1 // pred_region
      %69 = dma.done [#allocation6], 2176
    $region29: #{tpu_custom_call.1} parent=1 // pred_fallthru
      _
    // Predicated region
    $region30: #{tpu_custom_call.1} parent=1 // pred_check
      _
    $region31: #{tpu_custom_call.1} parent=1 // pred_check_branch
      %71 = sbr.rel (0) target = $region33
    $region32: #{tpu_custom_call.1} parent=1 // pred_region
      %72 = dma.done [#allocation9], 2048
    $region33: #{tpu_custom_call.1} parent=1 // pred_fallthru
      _
    %v74 = vld [vmem:[#allocation7] sm:$0xf]
    %v75 = vld [vmem:[#allocation7 + $0x4] sm:$0xf]
    %v76 = vld [vmem:[#allocation7 + $0x8] sm:$0xf]
    %v77 = vld [vmem:[#allocation7 + $0xc] sm:$0xf]
    %v78 = vld [vmem:[#allocation7 + $0x10] sm:$0xf]
    %v79 = vld [vmem:[#allocation7 + $0x14] sm:$0xf]
    %v80 = vld [vmem:[#allocation7 + $0x18] sm:$0xf]
    %v81 = vld [vmem:[#allocation7 + $0x1c] sm:$0xf]
    %v82 = vld [vmem:[#allocation7 + $0x20] sm:$0xf]
    %v83 = vld [vmem:[#allocation7 + $0x24] sm:$0xf]
    %v84 = vld [vmem:[#allocation7 + $0x28] sm:$0xf]
    %v85 = vld [vmem:[#allocation7 + $0x2c] sm:$0xf]
    %v86 = vld [vmem:[#allocation7 + $0x30] sm:$0xf]
    %v87 = vld [vmem:[#allocation7 + $0x34] sm:$0xf]
    %v88 = vld [vmem:[#allocation7 + $0x38] sm:$0xf]
    %v89 = vld [vmem:[#allocation7 + $0x3c] sm:$0xf]
    %v90 = vld [vmem:[#allocation7 + $0x40] sm:$0xf]
    %v91 = vld [vmem:[#allocation7 + $0x44] sm:$0xf]
    %v92 = vld [vmem:[#allocation7 + $0x48] sm:$0xf]
    %v93 = vld [vmem:[#allocation7 + $0x4c] sm:$0xf]
    %v94 = vld [vmem:[#allocation7 + $0x50] sm:$0xf]
    %v95 = vld [vmem:[#allocation7 + $0x54] sm:$0xf]
    %v96 = vld [vmem:[#allocation7 + $0x58] sm:$0xf]
    %v97 = vld [vmem:[#allocation7 + $0x5c] sm:$0xf]
    %v98 = vld [vmem:[#allocation7 + $0x60] sm:$0xf]
    %v99 = vld [vmem:[#allocation7 + $0x64] sm:$0xf]
    %v100 = vld [vmem:[#allocation7 + $0x68] sm:$0xf]
    %v101 = vld [vmem:[#allocation7 + $0x6c] sm:$0xf]
    %v102 = vld [vmem:[#allocation7 + $0x70] sm:$0xf]
    %v103 = vld [vmem:[#allocation7 + $0x74] sm:$0xf]
    %v104 = vld [vmem:[#allocation7 + $0x78] sm:$0xf]
    %v105 = vld [vmem:[#allocation7 + $0x7c] sm:$0xf]
    %v106 = vld [vmem:[#allocation7 + $0x80] sm:$0xf]
    %v107 = vld [vmem:[#allocation7 + $0x84] sm:$0xf]
    %v108 = vld [vmem:[#allocation8] sm:$0xff]
    %v109 = vld [vmem:[#allocation8 + $0x8] sm:$0xff]
    %v110 = vld [vmem:[#allocation8 + $0x10] sm:$0xff]
    %v111 = vld [vmem:[#allocation8 + $0x18] sm:$0xff]
    %v112 = vld [vmem:[#allocation8 + $0x20] sm:$0xff]
    %v113 = vld [vmem:[#allocation8 + $0x28] sm:$0xff]
    %v114 = vld [vmem:[#allocation8 + $0x30] sm:$0xff]
    %v115 = vld [vmem:[#allocation8 + $0x38] sm:$0xff]
    %v116 = vld [vmem:[#allocation8 + $0x40] sm:$0xff]
    %v117 = vld [vmem:[#allocation8 + $0x48] sm:$0xff]
    %v118 = vld [vmem:[#allocation8 + $0x50] sm:$0xff]
    %v119 = vld [vmem:[#allocation8 + $0x58] sm:$0xff]
    %v120 = vld [vmem:[#allocation8 + $0x60] sm:$0xff]
    %v121 = vld [vmem:[#allocation8 + $0x68] sm:$0xff]
    %v122 = vld [vmem:[#allocation8 + $0x70] sm:$0xff]
    %v123 = vld [vmem:[#allocation2] sm:$0xf]
    %v124 = vld [vmem:[#allocation2 + $0x4] sm:$0xf]
    %v125 = vld [vmem:[#allocation2 + $0x8] sm:$0xf]
    %v126 = vld [vmem:[#allocation2 + $0xc] sm:$0xf]
    %v135 = vunpack.c.l.b16 %v74
    %v136 = vunpack.c.l.b16 %v75
    %v137 = vunpack.c.l.b16 %v76
    %v138 = vunpack.c.l.b16 %v77
    %v139 = vunpack.c.l.b16 %v78
    %v140 = vunpack.c.l.b16 %v79
    %v141 = vunpack.c.l.b16 %v80
    %v142 = vunpack.c.l.b16 %v81
    %v143 = vpack.c.b16 %v136, %v135
    %v144 = vpack.c.b16 %v138, %v137
    %v145 = vpack.c.b16 %v140, %v139
    %v146 = vpack.c.b16 %v142, %v141
    %v151 = vunpack.c.l.b16 %v123
    %v152 = vunpack.c.l.b16 %v124
    %v153 = vunpack.c.l.b16 %v125
    %v154 = vunpack.c.l.b16 %v126
    %v155 = vpack.c.b16 %v152, %v151
    %v156 = vpack.c.b16 %v154, %v153
    %vm159 = vcmask 261120
    %v161 = vsel %vm159, %v143, 0
    %v164 = vsel %vm159, %v144, 0
    %v167 = vsel %vm159, %v145, 0
    %v170 = vsel %vm159, %v146, 0
    %172 = vmatprep.subr.bf16.mxu0 0
    %173 = vmatpush1.bf16.msra.mxu0 %v155
    %174 = vmatprep.subr.bf16.mxu0 0
    %175 = vmatpush1.bf16.msra.mxu0 %v156
    %176 = vmatprep.subr.bf16.mxu0 0
    %177 = vmatpush1.bf16.msra.mxu0 0
    %178 = vmatprep.subr.bf16.mxu0 0
    %179 = vmatpush1.bf16.msra.mxu0 0
    %180 = vmatprep.subr.bf16.mxu0 0
    %181 = vmatpush1.bf16.msra.mxu0 0
    %182 = vmatprep.subr.bf16.mxu0 0
    %183 = vmatpush1.bf16.msra.mxu0 0
    %184 = vmatprep.subr.bf16.mxu0 0
    %185 = vmatpush1.bf16.msra.mxu0 0
    %186 = vmatprep.subr.bf16.mxu0 0
    %187 = vmatpush1.bf16.msra.mxu0 0
    %188 = vmatprep.subr.bf16.mxu0 0
    %189 = vmatpush1.bf16.msra.mxu0 0
    %190 = vmatprep.subr.bf16.mxu0 0
    %191 = vmatpush1.bf16.msra.mxu0 0
    %192 = vmatprep.subr.bf16.mxu0 0
    %193 = vmatpush1.bf16.msra.mxu0 0
    %194 = vmatprep.subr.bf16.mxu0 0
    %195 = vmatpush1.bf16.msra.mxu0 0
    %196 = vmatprep.subr.bf16.mxu0 0
    %197 = vmatpush1.bf16.msra.mxu0 0
    %198 = vmatprep.subr.bf16.mxu0 0
    %199 = vmatpush1.bf16.msra.mxu0 0
    %200 = vmatprep.subr.bf16.mxu0 0
    %201 = vmatpush1.bf16.msra.mxu0 0
    %202 = vmatprep.subr.bf16.mxu0 0
    %203 = vmatpush1.bf16.msra.mxu0 0
    %204 = vmatprep.mubr.bf16.mxu0 0
    %205 = vmatmul.mubr.bf16.gmra.mrb[0].mxu0 %v161
    %v206 = vpop.f32.mrb[0].mxu0
    %v207 = vadd.f32 %v108, %v206
    %v208 = vpop.f32.mrb[0].mxu0
    %v209 = vpop.f32.mrb[0].mxu0
    %v210 = vadd.f32 %v109, %v209
    %v211 = vpop.f32.mrb[0].mxu0
    %212 = vmatprep.mubr.bf16.mxu0 0
    %213 = vmatmul.mubr.bf16.gmra.mrb[0].mxu0 %v164
    %v214 = vpop.f32.mrb[0].mxu0
    %v215 = vadd.f32 %v110, %v214
    %v216 = vpop.f32.mrb[0].mxu0
    %v217 = vpop.f32.mrb[0].mxu0
    %v218 = vadd.f32 %v111, %v217
    %v219 = vpop.f32.mrb[0].mxu0
    %220 = vmatprep.mubr.bf16.mxu0 0
    %221 = vmatmul.mubr.bf16.gmra.mrb[0].mxu0 %v167
    %v222 = vpop.f32.mrb[0].mxu0
    %v223 = vadd.f32 %v112, %v222
    %v224 = vpop.f32.mrb[0].mxu0
    %v225 = vpop.f32.mrb[0].mxu0
    %v226 = vadd.f32 %v113, %v225
    %v227 = vpop.f32.mrb[0].mxu0
    %228 = vmatprep.mubr.bf16.mxu0 0
    %229 = vmatmul.mubr.bf16.gmra.mrb[0].mxu0 %v170
    %v230 = vpop.f32.mrb[0].mxu0
    %v231 = vadd.f32 %v114, %v230
    %v232 = vpop.f32.mrb[0].mxu0
    %v233 = vpop.f32.mrb[0].mxu0
    %v234 = vadd.f32 %v115, %v233
    %v235 = vpop.f32.mrb[0].mxu0
    %236 = vdwg.mxu0
    %vm237 = vcmp.ge.f32.partialorder %v207, 0.0
    %vm238 = vcmp.ge.f32.partialorder %v210, 0.0
    %vm239 = vcmp.ge.f32.partialorder %v215, 0.0
    %vm240 = vcmp.ge.f32.partialorder %v218, 0.0
    %vm241 = vcmp.ge.f32.partialorder %v223, 0.0
    %vm242 = vcmp.ge.f32.partialorder %v226, 0.0
    %vm243 = vcmp.ge.f32.partialorder %v231, 0.0
    %vm244 = vcmp.ge.f32.partialorder %v234, 0.0
    %v245 = vmul.f32 %v207, 0.01
    %v246 = vmul.f32 %v210, 0.01
    %v247 = vmul.f32 %v215, 0.01
    %v248 = vmul.f32 %v218, 0.01
    %v249 = vmul.f32 %v223, 0.01
    %v250 = vmul.f32 %v226, 0.01
    %v251 = vmul.f32 %v231, 0.01
    %v252 = vmul.f32 %v234, 0.01
    %v253 = vsel %vm237, %v207, %v245
    %v254 = vsel %vm238, %v210, %v246
    %v255 = vsel %vm239, %v215, %v247
    %v256 = vsel %vm240, %v218, %v248
    %v257 = vsel %vm241, %v223, %v249
    %v258 = vsel %vm242, %v226, %v250
    %v259 = vsel %vm243, %v231, %v251
    %v260 = vsel %vm244, %v234, %v252
    %v261 = vpack.c.bf16 %v254, %v253
    %v262 = vpack.c.bf16 %v256, %v255
    %v263 = vpack.c.bf16 %v258, %v257
    %v264 = vpack.c.bf16 %v260, %v259
    %v269 = vunpack.c.l.b16 %v82
    %v270 = vunpack.c.l.b16 %v83
    %v271 = vunpack.c.l.b16 %v84
    %v272 = vunpack.c.l.b16 %v85
    %v273 = vpack.c.b16 %v270, %v269
    %v274 = vpack.c.b16 %v272, %v271
    %vm275 = vcmask 523264
    %v277 = vsel %vm275, %v273, 0
    %v280 = vsel %vm275, %v274, 0
    %282 = vmatprep.subr.bf16.mxu0 0
    %283 = vmatpush1.bf16.msra.mxu0 %v261
    %284 = vmatprep.subr.bf16.mxu0 0
    %285 = vmatpush1.bf16.msra.mxu0 %v262
    %286 = vmatprep.subr.bf16.mxu0 0
    %287 = vmatpush1.bf16.msra.mxu0 %v263
    %288 = vmatprep.subr.bf16.mxu0 0
    %289 = vmatpush1.bf16.msra.mxu0 %v264
    %290 = vmatprep.subr.bf16.mxu0 0
    %291 = vmatpush1.bf16.msra.mxu0 0
    %292 = vmatprep.subr.bf16.mxu0 0
    %293 = vmatpush1.bf16.msra.mxu0 0
    %294 = vmatprep.subr.bf16.mxu0 0
    %295 = vmatpush1.bf16.msra.mxu0 0
    %296 = vmatprep.subr.bf16.mxu0 0
    %297 = vmatpush1.bf16.msra.mxu0 0
    %298 = vmatprep.subr.bf16.mxu0 0
    %299 = vmatpush1.bf16.msra.mxu0 0
    %300 = vmatprep.subr.bf16.mxu0 0
    %301 = vmatpush1.bf16.msra.mxu0 0
    %302 = vmatprep.subr.bf16.mxu0 0
    %303 = vmatpush1.bf16.msra.mxu0 0
    %304 = vmatprep.subr.bf16.mxu0 0
    %305 = vmatpush1.bf16.msra.mxu0 0
    %306 = vmatprep.subr.bf16.mxu0 0
    %307 = vmatpush1.bf16.msra.mxu0 0
    %308 = vmatprep.subr.bf16.mxu0 0
    %309 = vmatpush1.bf16.msra.mxu0 0
    %310 = vmatprep.subr.bf16.mxu0 0
    %311 = vmatpush1.bf16.msra.mxu0 0
    %312 = vmatprep.subr.bf16.mxu0 0
    %313 = vmatpush1.bf16.msra.mxu0 0
    %314 = vmatprep.mubr.bf16.mxu0 0
    %315 = vmatmul.mubr.bf16.gmra.mrb[0].mxu0 %v277
    %v316 = vpop.f32.mrb[0].mxu0
    %v317 = vadd.f32 %v116, %v316
    %v318 = vpop.f32.mrb[0].mxu0
    %v319 = vpop.f32.mrb[0].mxu0
    %v320 = vadd.f32 %v117, %v319
    %v321 = vpop.f32.mrb[0].mxu0
    %322 = vmatprep.mubr.bf16.mxu0 0
    %323 = vmatmul.mubr.bf16.gmra.mrb[0].mxu0 %v280
    %v324 = vpop.f32.mrb[0].mxu0
    %v325 = vadd.f32 %v118, %v324
    %v326 = vpop.f32.mrb[0].mxu0
    %v327 = vpop.f32.mrb[0].mxu0
    %v328 = vadd.f32 %v119, %v327
    %v329 = vpop.f32.mrb[0].mxu0
    %330 = vdwg.mxu0
    %vm331 = vcmp.ge.f32.partialorder %v317, 0.0
    %vm332 = vcmp.ge.f32.partialorder %v320, 0.0
    %vm333 = vcmp.ge.f32.partialorder %v325, 0.0
    %vm334 = vcmp.ge.f32.partialorder %v328, 0.0
    %v335 = vmul.f32 %v317, 0.01
    %v336 = vmul.f32 %v320, 0.01
    %v337 = vmul.f32 %v325, 0.01
    %v338 = vmul.f32 %v328, 0.01
    %v339 = vsel %vm331, %v317, %v335
    %v340 = vsel %vm332, %v320, %v336
    %v341 = vsel %vm333, %v325, %v337
    %v342 = vsel %vm334, %v328, %v338
    %v343 = vpack.c.bf16 %v340, %v339
    %v344 = vpack.c.bf16 %v342, %v341
    %v347 = vunpack.c.l.b16 %v86
    %v348 = vunpack.c.l.b16 %v87
    %v349 = vpack.c.b16 %v348, %v347
    %v351 = vsel %vm159, %v349, 0
    %353 = vmatprep.subr.bf16.mxu0 0
    %354 = vmatpush1.bf16.msra.mxu0 %v343
    %355 = vmatprep.subr.bf16.mxu0 0
    %356 = vmatpush1.bf16.msra.mxu0 %v344
    %357 = vmatprep.subr.bf16.mxu0 0
    %358 = vmatpush1.bf16.msra.mxu0 0
    %359 = vmatprep.subr.bf16.mxu0 0
    %360 = vmatpush1.bf16.msra.mxu0 0
    %361 = vmatprep.subr.bf16.mxu0 0
    %362 = vmatpush1.bf16.msra.mxu0 0
    %363 = vmatprep.subr.bf16.mxu0 0
    %364 = vmatpush1.bf16.msra.mxu0 0
    %365 = vmatprep.subr.bf16.mxu0 0
    %366 = vmatpush1.bf16.msra.mxu0 0
    %367 = vmatprep.subr.bf16.mxu0 0
    %368 = vmatpush1.bf16.msra.mxu0 0
    %369 = vmatprep.subr.bf16.mxu0 0
    %370 = vmatpush1.bf16.msra.mxu0 0
    %371 = vmatprep.subr.bf16.mxu0 0
    %372 = vmatpush1.bf16.msra.mxu0 0
    %373 = vmatprep.subr.bf16.mxu0 0
    %374 = vmatpush1.bf16.msra.mxu0 0
    %375 = vmatprep.subr.bf16.mxu0 0
    %376 = vmatpush1.bf16.msra.mxu0 0
    %377 = vmatprep.subr.bf16.mxu0 0
    %378 = vmatpush1.bf16.msra.mxu0 0
    %379 = vmatprep.subr.bf16.mxu0 0
    %380 = vmatpush1.bf16.msra.mxu0 0
    %381 = vmatprep.subr.bf16.mxu0 0
    %382 = vmatpush1.bf16.msra.mxu0 0
    %383 = vmatprep.subr.bf16.mxu0 0
    %384 = vmatpush1.bf16.msra.mxu0 0
    %385 = vmatprep.mubr.bf16.mxu0 0
    %386 = vmatmul.mubr.bf16.gmra.mrb[0].mxu0 %v351
    %v387 = vpop.f32.mrb[0].mxu0
    %v388 = vadd.f32 %v120, %v387
    %v389 = vpop.f32.mrb[0].mxu0
    %v390 = vpop.f32.mrb[0].mxu0
    %v391 = vadd.f32 %v121, %v390
    %v392 = vpop.f32.mrb[0].mxu0
    %393 = vdwg.mxu0
    %vm394 = vcmp.ge.f32.partialorder %v388, 0.0
    %vm395 = vcmp.ge.f32.partialorder %v391, 0.0
    %v396 = vmul.f32 %v388, 0.01
    %v397 = vmul.f32 %v391, 0.01
    %v398 = vsel %vm394, %v388, %v396
    %v399 = vsel %vm395, %v391, %v397
    %v400 = vpack.c.bf16 %v399, %v398
    %v403 = vunpack.c.l.b16 %v88
    %v404 = vunpack.c.l.b16 %v89
    %v405 = vpack.c.b16 %v404, %v403
    %vm406 = vcmask 130048
    %v408 = vsel %vm406, %v405, 0
    %410 = vmatprep.subr.bf16.mxu0 0
    %411 = vmatpush1.bf16.msra.mxu0 %v400
    %412 = vmatprep.subr.bf16.mxu0 0
    %413 = vmatpush1.bf16.msra.mxu0 0
    %414 = vmatprep.subr.bf16.mxu0 0
    %415 = vmatpush1.bf16.msra.mxu0 0
    %416 = vmatprep.subr.bf16.mxu0 0
    %417 = vmatpush1.bf16.msra.mxu0 0
    %418 = vmatprep.subr.bf16.mxu0 0
    %419 = vmatpush1.bf16.msra.mxu0 0
    %420 = vmatprep.subr.bf16.mxu0 0
    %421 = vmatpush1.bf16.msra.mxu0 0
    %422 = vmatprep.subr.bf16.mxu0 0
    %423 = vmatpush1.bf16.msra.mxu0 0
    %424 = vmatprep.subr.bf16.mxu0 0
    %425 = vmatpush1.bf16.msra.mxu0 0
    %426 = vmatprep.subr.bf16.mxu0 0
    %427 = vmatpush1.bf16.msra.mxu0 0
    %428 = vmatprep.subr.bf16.mxu0 0
    %429 = vmatpush1.bf16.msra.mxu0 0
    %430 = vmatprep.subr.bf16.mxu0 0
    %431 = vmatpush1.bf16.msra.mxu0 0
    %432 = vmatprep.subr.bf16.mxu0 0
    %433 = vmatpush1.bf16.msra.mxu0 0
    %434 = vmatprep.subr.bf16.mxu0 0
    %435 = vmatpush1.bf16.msra.mxu0 0
    %436 = vmatprep.subr.bf16.mxu0 0
    %437 = vmatpush1.bf16.msra.mxu0 0
    %438 = vmatprep.subr.bf16.mxu0 0
    %439 = vmatpush1.bf16.msra.mxu0 0
    %440 = vmatprep.subr.bf16.mxu0 0
    %441 = vmatpush1.bf16.msra.mxu0 0
    %442 = vmatprep.mubr.bf16.mxu0 0
    %443 = vmatmul.mubr.bf16.gmra.mrb[0].mxu0 %v408
    %v444 = vpop.f32.mrb[0].mxu0
    %v445 = vadd.f32 %v122, %v444
    %v446 = vpop.f32.mrb[0].mxu0
    %v447 = vpop.f32.mrb[0].mxu0
    %v448 = vpop.f32.mrb[0].mxu0
    %449 = vdwg.mxu0
    %v450 = vlaneseq
    %v451 = vand.u32 %v450, 127
    %vm452 = vcmp.lt.s32.totalorder %v451, 16
    %v454 = vrot.slane %v445, 1
    %v456 = vsel %vm452, %v445, %v454
    %v457 = vpack.c.bf16 %v456, %v456
    %v459 = vpack.i.b16 %v457, %v457
    %v461 = vlaneseq
    %v462 = vshrl.u32 %v461, 7
    %v463 = vsub.s32 0, %v462
    %v464 = vrot.slane %v459, %v463
    %v466 = vunpack.c.l.b16 %v464
    %v467 = vpack.c.b16 %v466, %v466
    %v469 = vmul.bf16 %v90, %v467
    %v470 = vmul.bf16 %v91, %v467
    %v471 = vld [vmem:[#allocation5] sm:$0xff]
    %v472 = vld [vmem:[#allocation5 + $0x8] sm:$0xff]
    %v475 = vunpack.c.l.b16 %v469
    %v476 = vunpack.c.l.b16 %v470
    %v477 = vpack.c.b16 %v476, %v475
    %v495 = vunpack.c.l.b16 %v92
    %v496 = vunpack.c.l.b16 %v93
    %v497 = vunpack.c.l.b16 %v94
    %v498 = vunpack.c.l.b16 %v95
    %v499 = vunpack.c.l.b16 %v96
    %v500 = vunpack.c.l.b16 %v97
    %v501 = vunpack.c.l.b16 %v98
    %v502 = vunpack.c.l.b16 %v99
    %v503 = vunpack.c.l.b16 %v100
    %v504 = vunpack.c.l.b16 %v101
    %v505 = vunpack.c.l.b16 %v102
    %v506 = vunpack.c.l.b16 %v103
    %v507 = vunpack.c.l.b16 %v104
    %v508 = vunpack.c.l.b16 %v105
    %v509 = vunpack.c.l.b16 %v106
    %v510 = vunpack.c.l.b16 %v107
    %v511 = vpack.c.b16 %v496, %v495
    %v512 = vpack.c.b16 %v498, %v497
    %v513 = vpack.c.b16 %v500, %v499
    %v514 = vpack.c.b16 %v502, %v501
    %v515 = vpack.c.b16 %v504, %v503
    %v516 = vpack.c.b16 %v506, %v505
    %v517 = vpack.c.b16 %v508, %v507
    %v518 = vpack.c.b16 %v510, %v509
    %527 = vmatprep.subr.bf16.mxu0 0
    %528 = vmatpush1.bf16.msra.mxu0 %v511
    %529 = vmatprep.subr.bf16.mxu0 0
    %530 = vmatpush1.bf16.msra.mxu0 %v512
    %531 = vmatprep.subr.bf16.mxu0 0
    %532 = vmatpush1.bf16.msra.mxu0 %v513
    %533 = vmatprep.subr.bf16.mxu0 0
    %534 = vmatpush1.bf16.msra.mxu0 %v514
    %535 = vmatprep.subr.bf16.mxu0 0
    %536 = vmatpush1.bf16.msra.mxu0 %v515
    %537 = vmatprep.subr.bf16.mxu0 0
    %538 = vmatpush1.bf16.msra.mxu0 %v516
    %539 = vmatprep.subr.bf16.mxu0 0
    %540 = vmatpush1.bf16.msra.mxu0 %v517
    %541 = vmatprep.subr.bf16.mxu0 0
    %542 = vmatpush1.bf16.msra.mxu0 %v518
    %543 = vmatprep.subr.bf16.mxu0 0
    %544 = vmatpush1.bf16.msra.mxu0 0
    %545 = vmatprep.subr.bf16.mxu0 0
    %546 = vmatpush1.bf16.msra.mxu0 0
    %547 = vmatprep.subr.bf16.mxu0 0
    %548 = vmatpush1.bf16.msra.mxu0 0
    %549 = vmatprep.subr.bf16.mxu0 0
    %550 = vmatpush1.bf16.msra.mxu0 0
    %551 = vmatprep.subr.bf16.mxu0 0
    %552 = vmatpush1.bf16.msra.mxu0 0
    %553 = vmatprep.subr.bf16.mxu0 0
    %554 = vmatpush1.bf16.msra.mxu0 0
    %555 = vmatprep.subr.bf16.mxu0 0
    %556 = vmatpush1.bf16.msra.mxu0 0
    %557 = vmatprep.subr.bf16.mxu0 0
    %558 = vmatpush1.bf16.msra.mxu0 0
    %559 = vmatprep.mubr.bf16.mxu0 0
    %560 = vmatmul.mubr.bf16.gmra.mrb[0].mxu0 %v477
    %v561 = vpop.f32.mrb[0].mxu0
    %v562 = vadd.f32 %v471, %v561
    %v563 = vpop.f32.mrb[0].mxu0
    %v564 = vpop.f32.mrb[0].mxu0
    %v565 = vadd.f32 %v472, %v564
    %v566 = vpop.f32.mrb[0].mxu0
    %567 = vdwg.mxu0
    %568 = vmax.xlane.f32.xlu0 %v562
    %v569 = vpop.xlane.xlu0 %568
    %570 = vmax.xlane.f32.xlu0 %v565
    %v571 = vpop.xlane.xlu0 %570
    %v572 = vsub.f32 %v562, %v569
    %v573 = vsub.f32 %v565, %v571
    %v574 = vmul.f32 %v572, 1.442695
    %v575 = vpow.pop %v574
    %v576 = vmul.f32 %v573, 1.442695
    %v577 = vpow.pop %v576
    %578 = vadd.xlane.f32.xlu0 %v575
    %v579 = vpop.xlane.xlu0 %578
    %580 = vadd.xlane.f32.xlu0 %v577
    %v581 = vpop.xlane.xlu0 %580
    %v582 = vrcp.pop %v579
    %v583 = vrcp.pop %v581
    %v584 = vmul.f32 %v575, %v582
    %v585 = vmul.f32 %v577, %v583
    %586 = vst [vmem:[#allocation10] sm:$0xff] %v584
    %587 = vst [vmem:[#allocation10 + $0x8] sm:$0xff] %v585
    // Predicated region
    $region34: #{tpu_custom_call.1} parent=1 // pred_check
      _
    $region35: #{tpu_custom_call.1} parent=1 // pred_check_branch
      %589 = sbr.rel (0) target = $region37
    $region36: #{tpu_custom_call.1} parent=1 // pred_region
      %s591 = ssub.s32 256, 256
      %592 = vsyncadd [#allocation4], %s591
      %s593 = sshll.u32 [#allocation10], 4
      %s594 = int_to_ptr.vmem [resolvable:$true] %s593
      %599 = dma.vmem_to_hbm [thread:$0]  %s594, 256, %s4, [#allocation4], 128, 128, 8
    $region37: #{tpu_custom_call.1} parent=1 // pred_fallthru
      _
    // Predicated region
    $region38: #{tpu_custom_call.1} parent=1 // pred_check
      _
    $region39: #{tpu_custom_call.1} parent=1 // pred_check_branch
      %601 = sbr.rel (0) target = $region41
    $region40: #{tpu_custom_call.1} parent=1 // pred_region
      %602 = dma.done [#allocation4], 256
    $region41: #{tpu_custom_call.1} parent=1 // pred_fallthru
      _
    %603 = vsyncpa [#allocation3], 1
    %604 = vsyncpa [#allocation6], 1
    %605 = vsyncpa [#allocation9], 1
    %606 = vsyncpa [#allocation4], 1

</llo_original>
